<compile_context>
chip_gen: v5e
topology: v5e:2x2
jax: 0.10.0
libtpu: 0.0.40
codegen_flags: <defaults>
</compile_context>

<pallas_src>
import functools

import jax
import jax.numpy as jnp
from jax.experimental import pallas as pl
from jax.experimental.pallas import tpu as pltpu

K = 3            # kernel_size
BN_EPS = 1e-5


# --------------------------------------------------------------------------
# Kernel
# --------------------------------------------------------------------------
def _gated_residual_kernel(xcat_ref, *rest, C, tc, has_r):
    """xcat_ref: (3*C, NL) f32 im2col operand [x_lft; x_mid; x_rgt], lane-dense.

    rest (has_r=True):  r_ref (tc, NL), w_ref (2*tc, 3*C), p_ref (2*tc, 2),
                        out_x_ref (tc, NL), out_r_ref (tc, NL)
    rest (has_r=False): w_ref, p_ref, out_x_ref
    """
    if has_r:
        r_ref, w_ref, p_ref, out_x_ref, out_r_ref = rest
    else:
        r_ref = out_r_ref = None
        w_ref, p_ref, out_x_ref = rest

    NL = out_x_ref.shape[1]
    inv_nl = 1.0 / NL

    # One fused MXU matmul: both branches (2*tc output rows) and all three taps
    # (contraction depth 3*C) at once.
    w = w_ref[...]                       # (2*tc, 3*C) f32
    y = jnp.dot(w, xcat_ref[...], preferred_element_type=jnp.float32)  # (2*tc, NL)

    # Training-mode BatchNorm1d: biased stats over the full (N, L) extent per
    # channel == full-row lane reduction in this layout.  Single traversal of
    # y: var = E[y^2] - mean^2, all in f32.  (Conv bias omitted -- it cancels
    # exactly under mean subtraction.)
    mean = jnp.sum(y, axis=1, keepdims=True) * inv_nl          # (2*tc, 1)
    ey2 = jnp.sum(y * y, axis=1, keepdims=True) * inv_nl
    var = ey2 - mean * mean

    pv = p_ref[...]                                            # (2*tc, 2) [gamma, beta]
    scale = pv[:, 0:1] * jax.lax.rsqrt(var + BN_EPS)
    yn = (y - mean) * scale + pv[:, 1:2]                       # (2*tc, NL)

    a = jnp.tanh(yn[0:tc, :])                                  # tanh branch rows
    g = jax.nn.sigmoid(yn[tc:2 * tc, :])                       # gate branch rows
    out = a * g                                                # (tc, NL)

    # Residual multiplies: the x rows for this output-channel block are the
    # already-resident "mid" third of x_cat (C_out == C_in for this module).
    start = C + pl.program_id(0) * tc
    if tc % 8 == 0:
        start = pl.multiple_of(start, 8)                       # aligned sublane slice
    xb = xcat_ref[pl.ds(start, tc), :]
    out_x_ref[...] = (out * xb).astype(out_x_ref.dtype)
    if has_r:
        out_r_ref[...] = (out * r_ref[...].astype(jnp.float32)).astype(out_r_ref.dtype)


# --------------------------------------------------------------------------
# Wrapper helpers
# --------------------------------------------------------------------------
def _flatten_ncl(a):
    n, c, l = a.shape
    return jnp.transpose(a, (1, 0, 2)).reshape(c, n * l)


def _unflatten_ncl(a2, n, c, l):
    return jnp.transpose(a2.reshape(c, n, l), (1, 0, 2))


def _build_xcat(x):
    """(N, C, L) -> (3*C, N*L) f32 im2col with per-sample seam zeros baked in."""
    n, c, l = x.shape
    x_l = jnp.pad(x, ((0, 0), (0, 0), (1, 0)))[:, :, :l]   # x[:, :, t-1], zero at t=0
    x_r = jnp.pad(x, ((0, 0), (0, 0), (0, 1)))[:, :, 1:]   # x[:, :, t+1], zero at t=L-1
    return jnp.concatenate(
        [_flatten_ncl(x_l), _flatten_ncl(x), _flatten_ncl(x_r)], axis=0
    ).astype(jnp.float32)


def _pack_weights(w_t, w_g, tc):
    """(Cout, Cin, K) x2 -> (2*C, 3*C) f32, block-interleaved: for channel block
    i, rows [i*2*tc : i*2*tc+tc] are the tanh branch, the next tc the gate."""
    c = w_t.shape[0]
    nb = c // tc

    def per_branch(w):                                       # col index = k*Cin + cin
        return jnp.transpose(w, (0, 2, 1)).reshape(c, K * c)

    wt = per_branch(w_t).reshape(nb, tc, K * c)
    wg = per_branch(w_g).reshape(nb, tc, K * c)
    return jnp.stack([wt, wg], axis=1).reshape(2 * c, K * c).astype(jnp.float32)


def _pack_bn(gamma_t, beta_t, gamma_g, beta_g, tc):
    """Per-channel BN vectors -> (2*C, 2) [gamma, beta], same row order as weights."""
    c = gamma_t.shape[0]
    nb = c // tc
    pt = jnp.stack([gamma_t, beta_t], axis=-1).reshape(nb, tc, 2)
    pg = jnp.stack([gamma_g, beta_g], axis=-1).reshape(nb, tc, 2)
    return jnp.stack([pt, pg], axis=1).reshape(2 * c, 2).astype(jnp.float32)


def _vmem_capacity_bytes():
    try:
        return int(pltpu.get_tpu_info().vmem_capacity_bytes)
    except Exception:
        return 64 * 1024 * 1024      # conservative default (v7x per-core VMEM)


def _vmem_footprint(c, nl, tc, has_r):
    f32 = 4
    xcat = 2 * 3 * c * nl * f32                 # im2col operand (worst case: 2 buffers)
    wts = 2 * (2 * tc * 3 * c * f32)            # double-buffered fused weights
    pv = 2 * (2 * tc * 2 * f32)
    streams = 3 if has_r else 1                 # r in + out_x (+ out_r) per-step tiles
    io = 2 * streams * tc * nl * f32
    interm = 10 * tc * nl * f32                 # y, y*y, yn, a, g, out, residual read
    return xcat + wts + pv + io + interm


def _pick_block_c(c, nl, has_r, vmem_cap):
    """Largest channel-block size that (a) is a multiple of 8 and divides C,
    (b) leaves grid length >= 2 (feeds both v7x TensorCores), (c) fits VMEM."""
    if c % 8 != 0 or c < 16:
        return c
    budget = int(0.75 * vmem_cap)
    cands = [t for t in (256, 128, 64, 32, 16, 8) if c % t == 0 and c // t >= 2]
    if not cands:
        return c
    for tc in cands:
        if _vmem_footprint(c, nl, tc, has_r) <= budget:
            return tc
    return cands[-1]


# --------------------------------------------------------------------------
# Forward
# --------------------------------------------------------------------------
def _forward(x, params, r, single_buffer_x):
    n, c, l = x.shape
    nl = n * l
    has_r = r is not None
    assert params["w_t"].shape == (c, c, K), "kernel assumes C_out == C_in"

    vmem_cap = _vmem_capacity_bytes()
    tc = _pick_block_c(c, nl, has_r, vmem_cap)
    nb = c // tc

    xcat = _build_xcat(x)                                            # (3C, NL) f32
    w_fused = _pack_weights(params["w_t"], params["w_g"], tc)        # (2C, 3C)
    p_fused = _pack_bn(params["gamma_t"], params["beta_t"],
                       params["gamma_g"], params["beta_g"], tc)      # (2C, 2)

    # x_cat is grid-invariant: single-buffer it (nothing to prefetch), halving
    # the largest VMEM consumer.  Per-step streams (r, outputs, weights) keep
    # the default double-buffered pipeline.
    if single_buffer_x:
        xcat_spec = pl.BlockSpec((3 * c, nl), lambda i: (0, 0),
                                 pipeline_mode=pl.Buffered(1))
    else:
        xcat_spec = pl.BlockSpec((3 * c, nl), lambda i: (0, 0))
    w_spec = pl.BlockSpec((2 * tc, 3 * c), lambda i: (i, 0))
    p_spec = pl.BlockSpec((2 * tc, 2), lambda i: (i, 0))
    row_spec = pl.BlockSpec((tc, nl), lambda i: (i, 0))

    vmem_limit = int(min(0.9 * vmem_cap,
                         max(1.5 * _vmem_footprint(c, nl, tc, has_r), 32 * 1024 * 1024)))
    cparams = pltpu.CompilerParams(dimension_semantics=("parallel",),
                                   vmem_limit_bytes=vmem_limit)

    kern = functools.partial(_gated_residual_kernel, C=c, tc=tc, has_r=has_r)

    if has_r:
        r2 = _flatten_ncl(r)
        out_x2, out_r2 = pl.pallas_call(
            kern,
            grid=(nb,),
            in_specs=[xcat_spec, row_spec, w_spec, p_spec],
            out_specs=(row_spec, row_spec),
            out_shape=(jax.ShapeDtypeStruct((c, nl), x.dtype),
                       jax.ShapeDtypeStruct((c, nl), x.dtype)),
            compiler_params=cparams,
        )(xcat, r2, w_fused, p_fused)
        return _unflatten_ncl(out_x2, n, c, l), _unflatten_ncl(out_r2, n, c, l)

    out_x2 = pl.pallas_call(
        kern,
        grid=(nb,),
        in_specs=[xcat_spec, w_spec, p_spec],
        out_specs=row_spec,
        out_shape=jax.ShapeDtypeStruct((c, nl), x.dtype),
        compiler_params=cparams,
    )(xcat, w_fused, p_fused)
    out_x = _unflatten_ncl(out_x2, n, c, l)
    # r is None => out * r == out * x; reuse the array (saves one read + write).
    # Note: returns the same array object twice (PyTorch returns distinct tensors).
    return out_x, out_x


def gated_residual_conv(x, params, r=None):
    """params hold PyTorch-shaped tensors: w_* (C,C,3), b_*/gamma_*/beta_* (C,)."""
    try:
        return _forward(x, params, r, single_buffer_x=True)
    except Exception:
        # Fallback if this jax build rejects pl.Buffered(buffer_count=1).
        return _forward(x, params, r, single_buffer_x=False)


# --------------------------------------------------------------------------
# Pure-JAX reference (mirrors the PyTorch forward, training-mode BN, with bias)
# --------------------------------------------------------------------------
def _reference(x, params, r=None):
    if r is None:
        r = x
    pad = (K - 1) // 2

    def branch(w, b, gamma, beta, act):
        y = jax.lax.conv_general_dilated(
            x, w, window_strides=(1,), padding=((pad, pad),),
            dimension_numbers=("NCH", "OIH", "NCH"))
        y = y + b[None, :, None]
        m = jnp.mean(y, axis=(0, 2), keepdims=True)
        v = jnp.mean((y - m) ** 2, axis=(0, 2), keepdims=True)
        y = (y - m) / jnp.sqrt(v + BN_EPS) * gamma[None, :, None] + beta[None, :, None]
        return act(y)

    a = branch(params["w_t"], params["b_t"], params["gamma_t"], params["beta_t"], jnp.tanh)
    g = branch(params["w_g"], params["b_g"], params["gamma_g"], params["beta_g"], jax.nn.sigmoid)
    out = a * g
    return out * x, out * r


def init_params(key, channels):
    ks = jax.random.split(key, 8)
    bound = 1.0 / jnp.sqrt(channels * K)
    u = lambda k, shape, lo, hi: jax.random.uniform(k, shape, jnp.float32, lo, hi)
    return {
        "w_t": u(ks[0], (channels, channels, K), -bound, bound),
        "b_t": u(ks[1], (channels,), -bound, bound),
        "gamma_t": u(ks[2], (channels,), 0.5, 1.5),
        "beta_t": u(ks[3], (channels,), -0.1, 0.1),
        "w_g": u(ks[4], (channels, channels, K), -bound, bound),
        "b_g": u(ks[5], (channels,), -bound, bound),
        "gamma_g": u(ks[6], (channels,), 0.5, 1.5),
        "beta_g": u(ks[7], (channels,), -0.1, 0.1),
    }


if __name__ == "__main__":
    key = jax.random.PRNGKey(0)
    k_x, k_r, k_p, k_x2, k_r2, k_p2 = jax.random.split(key, 6)

    # Small case (single grid step), explicit residual r.
    N, C, L = 2, 4, 16
    x = jax.random.normal(k_x, (N, C, L), jnp.float32)
    r = jax.random.normal(k_r, (N, C, L), jnp.float32)
    params = init_params(k_p, C)

    out_x, out_r = gated_residual_conv(x, params, r)
    jax.block_until_ready((out_x, out_r))
    ref_x, ref_r = _reference(x, params, r)
    assert jnp.allclose(out_x, ref_x, atol=1e-4, rtol=1e-4)
    assert jnp.allclose(out_r, ref_r, atol=1e-4, rtol=1e-4)

    # r=None path: single-output kernel, result reused for both returns.
    out_xa, out_ra = gated_residual_conv(x, params)
    jax.block_until_ready((out_xa, out_ra))
    ref_xa, ref_ra = _reference(x, params)
    assert jnp.allclose(out_xa, ref_xa, atol=1e-4, rtol=1e-4)
    assert jnp.allclose(out_ra, ref_ra, atol=1e-4, rtol=1e-4)

    # Larger case exercising the channel-parallel grid (C=16 -> tc=8, 2 blocks),
    # the fused (2*tc, 3*C) weight blocks, and a 128-wide lane-dense output.
    N2, C2, L2 = 2, 16, 64
    x_b = jax.random.normal(k_x2, (N2, C2, L2), jnp.float32)
    r_b = jax.random.normal(k_r2, (N2, C2, L2), jnp.float32)
    params_b = init_params(k_p2, C2)

    out_xb, out_rb = gated_residual_conv(x_b, params_b, r_b)
    jax.block_until_ready((out_xb, out_rb))
    ref_xb, ref_rb = _reference(x_b, params_b, r_b)
    assert jnp.allclose(out_xb, ref_xb, atol=1e-4, rtol=1e-4)
    assert jnp.allclose(out_rb, ref_rb, atol=1e-4, rtol=1e-4)

    print("KERNEL_OK")
</pallas_src>

<mosaic_0001>
module attributes {stable_mosaic.version = 11 : i64} {
  func.func @_gated_residual_kernel(%arg0: i32, %arg1: memref<12x32xf32, #tpu.memory_space<vmem>>, %arg2: memref<4x32xf32, #tpu.memory_space<vmem>>, %arg3: memref<8x12xf32, #tpu.memory_space<vmem>>, %arg4: memref<8x2xf32, #tpu.memory_space<vmem>>, %arg5: memref<4x32xf32, #tpu.memory_space<vmem>>, %arg6: memref<4x32xf32, #tpu.memory_space<vmem>>) attributes {dimension_semantics = [#tpu.dimension_semantics<parallel>], iteration_bounds = array<i64: 1>, scalar_prefetch = 0 : i64, scratch_operands = 0 : i64, tpu.core_type = #tpu.core_type<tc>, window_params = [{pipeline_mode = #tpu.pipeline_mode<synchronous>, transform_indices = @transform_0, window_bounds = array<i64: 12, 32>}, {transform_indices = @transform_1, window_bounds = array<i64: 4, 32>}, {transform_indices = @transform_2, window_bounds = array<i64: 8, 12>}, {transform_indices = @transform_3, window_bounds = array<i64: 8, 2>}, {transform_indices = @transform_4, window_bounds = array<i64: 4, 32>}, {transform_indices = @transform_5, window_bounds = array<i64: 4, 32>}]} {
    %c0 = arith.constant 0 : index
    %c0_0 = arith.constant 0 : index
    %0 = vector.load %arg3[%c0, %c0_0] : memref<8x12xf32, #tpu.memory_space<vmem>>, vector<8x12xf32>
    %c0_1 = arith.constant 0 : index
    %c0_2 = arith.constant 0 : index
    %1 = vector.load %arg1[%c0_1, %c0_2] : memref<12x32xf32, #tpu.memory_space<vmem>>, vector<12x32xf32>
    %cst = arith.constant dense<0.000000e+00> : vector<8x32xf32>
    %2 = tpu.matmul %0, %1, %cst {dimension_numbers = #tpu.dot_dimension_numbers<[1], [0], [0], [1], [0, 0, 1, 1], [], []>} : vector<8x12xf32>, vector<12x32xf32>, vector<8x32xf32> -> vector<8x32xf32>
    %cst_3 = arith.constant dense<0.000000e+00> : vector<8xf32>
    %3 = vector.multi_reduction <add>, %2, %cst_3 [1] : vector<8x32xf32> to vector<8xf32>
    %4 = vector.shape_cast %3 : vector<8xf32> to vector<8x1xf32>
    %cst_4 = arith.constant 3.125000e-02 : f32
    %5 = vector.broadcast %cst_4 : f32 to vector<8x1xf32>
    %6 = arith.mulf %4, %5 : vector<8x1xf32>
    %7 = arith.mulf %2, %2 : vector<8x32xf32>
    %cst_5 = arith.constant dense<0.000000e+00> : vector<8xf32>
    %8 = vector.multi_reduction <add>, %7, %cst_5 [1] : vector<8x32xf32> to vector<8xf32>
    %9 = vector.shape_cast %8 : vector<8xf32> to vector<8x1xf32>
    %cst_6 = arith.constant 3.125000e-02 : f32
    %10 = vector.broadcast %cst_6 : f32 to vector<8x1xf32>
    %11 = arith.mulf %9, %10 : vector<8x1xf32>
    %12 = arith.mulf %6, %6 : vector<8x1xf32>
    %13 = arith.subf %11, %12 : vector<8x1xf32>
    %c0_7 = arith.constant 0 : index
    %c0_8 = arith.constant 0 : index
    %14 = vector.load %arg4[%c0_7, %c0_8] : memref<8x2xf32, #tpu.memory_space<vmem>>, vector<8x2xf32>
    %15 = vector.extract_strided_slice %14 {offsets = [0, 0], sizes = [8, 1], strides = [1, 1]} : vector<8x2xf32> to vector<8x1xf32>
    %cst_9 = arith.constant 9.99999974E-6 : f32
    %16 = vector.broadcast %cst_9 : f32 to vector<8x1xf32>
    %17 = arith.addf %13, %16 : vector<8x1xf32>
    %18 = math.rsqrt %17 : vector<8x1xf32>
    %19 = arith.mulf %15, %18 : vector<8x1xf32>
    %20 = vector.broadcast %6 : vector<8x1xf32> to vector<8x32xf32>
    %21 = arith.subf %2, %20 : vector<8x32xf32>
    %22 = vector.broadcast %19 : vector<8x1xf32> to vector<8x32xf32>
    %23 = arith.mulf %21, %22 : vector<8x32xf32>
    %24 = vector.extract_strided_slice %14 {offsets = [0, 1], sizes = [8, 1], strides = [1, 1]} : vector<8x2xf32> to vector<8x1xf32>
    %25 = vector.broadcast %24 : vector<8x1xf32> to vector<8x32xf32>
    %26 = arith.addf %23, %25 : vector<8x32xf32>
    %27 = vector.extract_strided_slice %26 {offsets = [0, 0], sizes = [4, 32], strides = [1, 1]} : vector<8x32xf32> to vector<4x32xf32>
    %28 = math.tanh %27 : vector<4x32xf32>
    %29 = vector.extract_strided_slice %26 {offsets = [4, 0], sizes = [4, 32], strides = [1, 1]} : vector<8x32xf32> to vector<4x32xf32>
    %30 = arith.negf %29 : vector<4x32xf32>
    %31 = math.exp %30 : vector<4x32xf32>
    %cst_10 = arith.constant 1.000000e+00 : f32
    %32 = vector.broadcast %cst_10 : f32 to vector<4x32xf32>
    %33 = arith.addf %32, %31 : vector<4x32xf32>
    %34 = arith.divf %32, %33 : vector<4x32xf32>
    %35 = arith.mulf %28, %34 : vector<4x32xf32>
    %c4_i32 = arith.constant 4 : i32
    %36 = arith.muli %arg0, %c4_i32 : i32
    %c4_i32_11 = arith.constant 4 : i32
    %37 = arith.addi %c4_i32_11, %36 : i32
    %38 = arith.index_cast %37 : i32 to index
    %c0_12 = arith.constant 0 : index
    %39 = vector.load %arg1[%38, %c0_12] : memref<12x32xf32, #tpu.memory_space<vmem>>, vector<4x32xf32>
    %40 = arith.mulf %35, %39 : vector<4x32xf32>
    %c0_13 = arith.constant 0 : index
    %c0_14 = arith.constant 0 : index
    %41 = vector.load %arg5[%c0_13, %c0_14] : memref<4x32xf32, #tpu.memory_space<vmem>>, vector<4x32xf32>
    tpu.vector_store %arg5[%c0_13, %c0_14], %40 {strides = array<i32>} : memref<4x32xf32, #tpu.memory_space<vmem>>, vector<4x32xf32>,
    %c0_15 = arith.constant 0 : index
    %c0_16 = arith.constant 0 : index
    %42 = vector.load %arg2[%c0_15, %c0_16] : memref<4x32xf32, #tpu.memory_space<vmem>>, vector<4x32xf32>
    %43 = arith.mulf %35, %42 : vector<4x32xf32>
    %c0_17 = arith.constant 0 : index
    %c0_18 = arith.constant 0 : index
    %44 = vector.load %arg6[%c0_17, %c0_18] : memref<4x32xf32, #tpu.memory_space<vmem>>, vector<4x32xf32>
    tpu.vector_store %arg6[%c0_17, %c0_18], %43 {strides = array<i32>} : memref<4x32xf32, #tpu.memory_space<vmem>>, vector<4x32xf32>,
    return
  }
  func.func @transform_0(%arg0: i32) -> (i32, i32) {
    %c0_i32 = arith.constant 0 : i32
    %c0_i32_0 = arith.constant 0 : i32
    %c0_i32_1 = arith.constant 0 : i32
    return %c0_i32, %c0_i32_0 : i32, i32
  }
  func.func @transform_1(%arg0: i32) -> (i32, i32) {
    %c0_i32 = arith.constant 0 : i32
    %c0_i32_0 = arith.constant 0 : i32
    return %arg0, %c0_i32 : i32, i32
  }
  func.func @transform_2(%arg0: i32) -> (i32, i32) {
    %c0_i32 = arith.constant 0 : i32
    %c0_i32_0 = arith.constant 0 : i32
    return %arg0, %c0_i32 : i32, i32
  }
  func.func @transform_3(%arg0: i32) -> (i32, i32) {
    %c0_i32 = arith.constant 0 : i32
    %c0_i32_0 = arith.constant 0 : i32
    return %arg0, %c0_i32 : i32, i32
  }
  func.func @transform_4(%arg0: i32) -> (i32, i32) {
    %c0_i32 = arith.constant 0 : i32
    %c0_i32_0 = arith.constant 0 : i32
    return %arg0, %c0_i32 : i32, i32
  }
  func.func @transform_5(%arg0: i32) -> (i32, i32) {
    %c0_i32 = arith.constant 0 : i32
    %c0_i32_0 = arith.constant 0 : i32
    return %arg0, %c0_i32 : i32, i32
  }
}

module attributes {stable_mosaic.version = 11 : i64} {
  func.func @_gated_residual_kernel(%arg0: i32, %arg1: memref<12x32xf32, #tpu.memory_space<vmem>>, %arg2: memref<4x32xf32, #tpu.memory_space<vmem>>, %arg3: memref<8x12xf32, #tpu.memory_space<vmem>>, %arg4: memref<8x2xf32, #tpu.memory_space<vmem>>, %arg5: memref<4x32xf32, #tpu.memory_space<vmem>>, %arg6: memref<4x32xf32, #tpu.memory_space<vmem>>) attributes {dimension_semantics = [#tpu.dimension_semantics<parallel>], iteration_bounds = array<i64: 1>, scalar_prefetch = 0 : i64, scratch_operands = 0 : i64, tpu.core_type = #tpu.core_type<tc>, window_params = [{pipeline_mode = #tpu.pipeline_mode<synchronous>, transform_indices = @transform_0, window_bounds = array<i64: 12, 32>}, {transform_indices = @transform_1, window_bounds = array<i64: 4, 32>}, {transform_indices = @transform_2, window_bounds = array<i64: 8, 12>}, {transform_indices = @transform_3, window_bounds = array<i64: 8, 2>}, {transform_indices = @transform_4, window_bounds = array<i64: 4, 32>}, {transform_indices = @transform_5, window_bounds = array<i64: 4, 32>}]} {
    %c0 = arith.constant 0 : index
    %c0_0 = arith.constant 0 : index
    %0 = vector.load %arg3[%c0, %c0_0] : memref<8x12xf32, #tpu.memory_space<vmem>>, vector<8x12xf32>
    %c0_1 = arith.constant 0 : index
    %c0_2 = arith.constant 0 : index
    %1 = vector.load %arg1[%c0_1, %c0_2] : memref<12x32xf32, #tpu.memory_space<vmem>>, vector<12x32xf32>
    %cst = arith.constant dense<0.000000e+00> : vector<8x32xf32>
    %2 = tpu.matmul %0, %1, %cst {dimension_numbers = #tpu.dot_dimension_numbers<[1], [0], [0], [1], [0, 0, 1, 1], [], []>} : vector<8x12xf32>, vector<12x32xf32>, vector<8x32xf32> -> vector<8x32xf32>
    %cst_3 = arith.constant dense<0.000000e+00> : vector<8xf32>
    %3 = vector.multi_reduction <add>, %2, %cst_3 [1] : vector<8x32xf32> to vector<8xf32>
    %4 = vector.shape_cast %3 : vector<8xf32> to vector<8x1xf32>
    %cst_4 = arith.constant 3.125000e-02 : f32
    %5 = vector.broadcast %cst_4 : f32 to vector<8x1xf32>
    %6 = arith.mulf %4, %5 : vector<8x1xf32>
    %7 = arith.mulf %2, %2 : vector<8x32xf32>
    %cst_5 = arith.constant dense<0.000000e+00> : vector<8xf32>
    %8 = vector.multi_reduction <add>, %7, %cst_5 [1] : vector<8x32xf32> to vector<8xf32>
    %9 = vector.shape_cast %8 : vector<8xf32> to vector<8x1xf32>
    %cst_6 = arith.constant 3.125000e-02 : f32
    %10 = vector.broadcast %cst_6 : f32 to vector<8x1xf32>
    %11 = arith.mulf %9, %10 : vector<8x1xf32>
    %12 = arith.mulf %6, %6 : vector<8x1xf32>
    %13 = arith.subf %11, %12 : vector<8x1xf32>
    %c0_7 = arith.constant 0 : index
    %c0_8 = arith.constant 0 : index
    %14 = vector.load %arg4[%c0_7, %c0_8] : memref<8x2xf32, #tpu.memory_space<vmem>>, vector<8x2xf32>
    %15 = vector.extract_strided_slice %14 {offsets = [0, 0], sizes = [8, 1], strides = [1, 1]} : vector<8x2xf32> to vector<8x1xf32>
    %cst_9 = arith.constant 9.99999974E-6 : f32
    %16 = vector.broadcast %cst_9 : f32 to vector<8x1xf32>
    %17 = arith.addf %13, %16 : vector<8x1xf32>
    %18 = math.rsqrt %17 : vector<8x1xf32>
    %19 = arith.mulf %15, %18 : vector<8x1xf32>
    %20 = vector.broadcast %6 : vector<8x1xf32> to vector<8x32xf32>
    %21 = arith.subf %2, %20 : vector<8x32xf32>
    %22 = vector.broadcast %19 : vector<8x1xf32> to vector<8x32xf32>
    %23 = arith.mulf %21, %22 : vector<8x32xf32>
    %24 = vector.extract_strided_slice %14 {offsets = [0, 1], sizes = [8, 1], strides = [1, 1]} : vector<8x2xf32> to vector<8x1xf32>
    %25 = vector.broadcast %24 : vector<8x1xf32> to vector<8x32xf32>
    %26 = arith.addf %23, %25 : vector<8x32xf32>
    %27 = vector.extract_strided_slice %26 {offsets = [0, 0], sizes = [4, 32], strides = [1, 1]} : vector<8x32xf32> to vector<4x32xf32>
    %28 = math.tanh %27 : vector<4x32xf32>
    %29 = vector.extract_strided_slice %26 {offsets = [4, 0], sizes = [4, 32], strides = [1, 1]} : vector<8x32xf32> to vector<4x32xf32>
    %30 = arith.negf %29 : vector<4x32xf32>
    %31 = math.exp %30 : vector<4x32xf32>
    %cst_10 = arith.constant 1.000000e+00 : f32
    %32 = vector.broadcast %cst_10 : f32 to vector<4x32xf32>
    %33 = arith.addf %32, %31 : vector<4x32xf32>
    %34 = arith.divf %32, %33 : vector<4x32xf32>
    %35 = arith.mulf %28, %34 : vector<4x32xf32>
    %c4_i32 = arith.constant 4 : i32
    %36 = arith.muli %arg0, %c4_i32 : i32
    %c4_i32_11 = arith.constant 4 : i32
    %37 = arith.addi %c4_i32_11, %36 : i32
    %38 = arith.index_cast %37 : i32 to index
    %c0_12 = arith.constant 0 : index
    %39 = vector.load %arg1[%38, %c0_12] : memref<12x32xf32, #tpu.memory_space<vmem>>, vector<4x32xf32>
    %40 = arith.mulf %35, %39 : vector<4x32xf32>
    %c0_13 = arith.constant 0 : index
    %c0_14 = arith.constant 0 : index
    %41 = vector.load %arg5[%c0_13, %c0_14] : memref<4x32xf32, #tpu.memory_space<vmem>>, vector<4x32xf32>
    tpu.vector_store %arg5[%c0_13, %c0_14], %40 {strides = array<i32>} : memref<4x32xf32, #tpu.memory_space<vmem>>, vector<4x32xf32>,
    %c0_15 = arith.constant 0 : index
    %c0_16 = arith.constant 0 : index
    %42 = vector.load %arg2[%c0_15, %c0_16] : memref<4x32xf32, #tpu.memory_space<vmem>>, vector<4x32xf32>
    %43 = arith.mulf %35, %42 : vector<4x32xf32>
    %c0_17 = arith.constant 0 : index
    %c0_18 = arith.constant 0 : index
    %44 = vector.load %arg6[%c0_17, %c0_18] : memref<4x32xf32, #tpu.memory_space<vmem>>, vector<4x32xf32>
    tpu.vector_store %arg6[%c0_17, %c0_18], %43 {strides = array<i32>} : memref<4x32xf32, #tpu.memory_space<vmem>>, vector<4x32xf32>,
    return
  }
  func.func @transform_0(%arg0: i32) -> (i32, i32) {
    %c0_i32 = arith.constant 0 : i32
    %c0_i32_0 = arith.constant 0 : i32
    %c0_i32_1 = arith.constant 0 : i32
    return %c0_i32, %c0_i32_0 : i32, i32
  }
  func.func @transform_1(%arg0: i32) -> (i32, i32) {
    %c0_i32 = arith.constant 0 : i32
    %c0_i32_0 = arith.constant 0 : i32
    return %arg0, %c0_i32 : i32, i32
  }
  func.func @transform_2(%arg0: i32) -> (i32, i32) {
    %c0_i32 = arith.constant 0 : i32
    %c0_i32_0 = arith.constant 0 : i32
    return %arg0, %c0_i32 : i32, i32
  }
  func.func @transform_3(%arg0: i32) -> (i32, i32) {
    %c0_i32 = arith.constant 0 : i32
    %c0_i32_0 = arith.constant 0 : i32
    return %arg0, %c0_i32 : i32, i32
  }
  func.func @transform_4(%arg0: i32) -> (i32, i32) {
    %c0_i32 = arith.constant 0 : i32
    %c0_i32_0 = arith.constant 0 : i32
    return %arg0, %c0_i32 : i32, i32
  }
  func.func @transform_5(%arg0: i32) -> (i32, i32) {
    %c0_i32 = arith.constant 0 : i32
    %c0_i32_0 = arith.constant 0 : i32
    return %arg0, %c0_i32 : i32, i32
  }
}

</mosaic_0001>

<llo_original>
// kernel: tpu_custom_call.1
$region0: #{tpu_custom_call.1}
  #allocation0 [shape = 'u32[]', space=smem, size = 0x4, offset = 0x4, fixed_abs, tag = 'smem constant byte address 0x4 - core index']
  #allocation1 [shape = 'u32[72,128]{1,0:T(1,128)}', space=vmem, size = 0x9000, scoped, tag = 'internal scratch']
  %s0 = inlined_call_operand.hbm [shape: f32[12,32], index: 0, kind: input, shape index: {}]
  %s1 = inlined_call_operand.hbm [shape: f32[4,32], index: 1, kind: input, shape index: {}]
  %s2 = inlined_call_operand.vmem [shape: f32[8,12], index: 2, kind: input, shape index: {}]
  %s3 = inlined_call_operand.vmem [shape: f32[8,2], index: 3, kind: input, shape index: {}]
  %s4 = inlined_call_operand.hbm [shape: f32[4,32], index: 4, kind: output, shape index: {0}]
  %s5 = inlined_call_operand.hbm [shape: f32[4,32], index: 5, kind: output, shape index: {1}]
  %6 = xla_tuple %s4, %s5
  %s7 = sld [smem:[#allocation0]]
  $region42: #{tpu_custom_call.1} parent=0
    _
  %s9 = ssub.s32 1, %s7
  %s10 = scalar_select 0, %s9, %s7
  $region1: #{tpu_custom_call.1} parent=0
    #allocation2 [shape = 'u8[8192]{0}', space=vmem, size = 0x2000, scoped, tag = 'input window, operand 0, single buffered']
    #allocation3 [shape = 's32[1]{0}', space=sflag, size = 0x4, scoped, tag = 'scoped memory for tpu_custom_call.1']
    #allocation4 [shape = 's32[1]{0}', space=sflag, size = 0x4, scoped, tag = 'scoped memory for tpu_custom_call.1']
    #allocation5 [shape = 'u8[2048]{0}', space=vmem, size = 0x800, scoped, tag = 'input window, operand 1, single buffered']
    #allocation6 [shape = 's32[1]{0}', space=sflag, size = 0x4, scoped, tag = 'scoped memory for tpu_custom_call.1']
    #allocation7 [shape = 'u8[2048]{0}', space=vmem, size = 0x800, scoped, tag = 'output window, operand 0, single buffered']
    #allocation8 [shape = 'u8[2048]{0}', space=vmem, size = 0x800, scoped, tag = 'output window, operand 1, single buffered']
    #allocation9 [shape = 's32[1]{0}', space=sflag, size = 0x4, scoped, tag = 'scoped memory for tpu_custom_call.1']
    %11 = vsyncpa [#allocation3], 0
    %12 = vsyncpa [#allocation6], 0
    %13 = vsyncpa [#allocation4], 0
    %14 = vsyncpa [#allocation9], 0
    // Predicated region
    $region2: #{tpu_custom_call.1} parent=1 // pred_check
      _
    $region3: #{tpu_custom_call.1} parent=1 // pred_check_branch
      %16 = sbr.rel (0) target = $region5
    $region4: #{tpu_custom_call.1} parent=1 // pred_region
      %18 = vsyncadd [#allocation3], 0
      %s19 = sshll.u32 %s0, 4
      %s20 = int_to_ptr.hbm [resolvable:$true] %s19
      %s21 = sshll.u32 [#allocation2], 4
      %s22 = int_to_ptr.vmem [resolvable:$true] %s21
      %27 = dma.hbm_to_vmem [thread:$0]  %s20, 256, %s22, [#allocation3], 128, 128, 8
    $region5: #{tpu_custom_call.1} parent=1 // pred_fallthru
      _
    // Predicated region
    $region6: #{tpu_custom_call.1} parent=1 // pred_check
      _
    $region7: #{tpu_custom_call.1} parent=1 // pred_check_branch
      %29 = sbr.rel (0) target = $region9
    $region8: #{tpu_custom_call.1} parent=1 // pred_region
      %31 = vsyncadd [#allocation6], 0
      %s33 = sshll.u32 %s1, 4
      %s34 = int_to_ptr.hbm [resolvable:$true] %s33
      %s35 = sshll.u32 [#allocation5], 4
      %s36 = int_to_ptr.vmem [resolvable:$true] %s35
      %38 = dma.hbm_to_vmem [thread:$0]  %s34, 64, %s36, [#allocation6]
    $region9: #{tpu_custom_call.1} parent=1 // pred_fallthru
      _
    // Predicated region
    $region10: #{tpu_custom_call.1} parent=1 // pred_check
      _
    $region11: #{tpu_custom_call.1} parent=1 // pred_check_branch
      %40 = sbr.rel (0) target = $region13
    $region12: #{tpu_custom_call.1} parent=1 // pred_region
      _
    $region13: #{tpu_custom_call.1} parent=1 // pred_fallthru
      _
    // Predicated region
    $region14: #{tpu_custom_call.1} parent=1 // pred_check
      _
    $region15: #{tpu_custom_call.1} parent=1 // pred_check_branch
      %42 = sbr.rel (0) target = $region17
    $region16: #{tpu_custom_call.1} parent=1 // pred_region
      _
    $region17: #{tpu_custom_call.1} parent=1 // pred_fallthru
      _
    // Predicated region
    $region18: #{tpu_custom_call.1} parent=1 // pred_check
      _
    $region19: #{tpu_custom_call.1} parent=1 // pred_check_branch
      %44 = sbr.rel (0) target = $region21
    $region20: #{tpu_custom_call.1} parent=1 // pred_region
      %46 = dma.done [#allocation3], 256
    $region21: #{tpu_custom_call.1} parent=1 // pred_fallthru
      _
    // Predicated region
    $region22: #{tpu_custom_call.1} parent=1 // pred_check
      _
    $region23: #{tpu_custom_call.1} parent=1 // pred_check_branch
      %48 = sbr.rel (0) target = $region25
    $region24: #{tpu_custom_call.1} parent=1 // pred_region
      %50 = dma.done [#allocation6], 64
    $region25: #{tpu_custom_call.1} parent=1 // pred_fallthru
      _
    %v51 = vld [vmem:[%s2] sm:$0xff]
    %v52 = vld [vmem:[#allocation2] sm:$0xff]
    %v53 = vld [vmem:[#allocation2 + $0x8] sm:$0xf]
    %vm54 = vcmask 97280
    %v56 = vsel %vm54, %v51, 0
    %vm58 = vcmask 1043456
    %v60 = vsel %vm58, %v53, 0
    %62 = vmatpush.msra.mxu0 0.0
    %63 = vmatpush.msra.mxu0 0.0
    %64 = vmatpush.msra.mxu0 0.0
    %65 = vmatpush.msra.mxu0 0.0
    %66 = vmatpush.msra.mxu0 0.0
    %67 = vmatpush.msra.mxu0 0.0
    %68 = vmatpush.msra.mxu0 0.0
    %69 = vmatpush.msra.mxu0 0.0
    %70 = vmatpush.msra.mxu0 0.0
    %71 = vmatpush.msra.mxu0 0.0
    %72 = vmatpush.msra.mxu0 0.0
    %73 = vmatpush.msra.mxu0 0.0
    %74 = vmatpush.msra.mxu0 0.0
    %75 = vmatpush.msra.mxu0 0.0
    %76 = vmatpush.msra.mxu0 %v60
    %77 = vmatpush.msra.mxu0 %v52
    %78 = vmatmul.f32.gmra.mxu0 %v56
    %v79 = vpop.f32.mrf.mxu0
    %v80 = vadd.f32 0.0, %v79
    %81 = vdwg.mxu0
    %vm82 = vcmask 261120
    %v83 = vsel %vm82, %v80, 0.0
    %84 = vadd.xlane.f32.xlu0 %v83
    %v85 = vpop.xlane.xlu0 %84
    %v86 = vmul.f32 %v85, 0.03125
    %v87 = vmul.f32 %v80, %v80
    %v88 = vsel %vm82, %v87, 0.0
    %89 = vadd.xlane.f32.xlu0 %v88
    %v90 = vpop.xlane.xlu0 %89
    %v91 = vmul.f32 %v90, 0.03125
    %v92 = vmul.f32 %v86, %v86
    %v93 = vsub.f32 %v91, %v92
    %v94 = vld [vmem:[%s3] sm:$0xff]
    %v95 = vadd.f32 %v93, 1e-05
    %v96 = vrsqrt.pop %v95
    %v97 = vmul.f32 %v96, %v95
    %v98 = vmul.f32 %v97, %v96
    %v99 = vmul.f32 0.5, %v98
    %v100 = vsub.f32 1.5, %v99
    %v101 = vmul.f32 %v96, %v100
    %vm102 = vweird.f32 %v95
    %vm103 = vweird.f32 %v96
    %vm104 = vmor %vm102, %vm103
    %v105 = vsel %vm104, %v96, %v101
    %v106 = vmul.f32 %v94, %v105
    %v107 = vsub.f32 %v80, %v86
    %109 = vset.pattern.permute.xlu0 0
    %110 = vperm.xlu0 %109, %v106
    %v111 = vpop.permute.xlu0 %110
    %v113 = vmul.f32 %v107, %v111
    %115 = vset.pattern.permute.xlu0 1
    %116 = vperm.xlu0 %115, %v94
    %v117 = vpop.permute.xlu0 %116
    %v119 = vadd.f32 %v113, %v117
    %v120 = vtanh.pop %v119
    %v121 = vxor.u32 %v119, 2147483648
    %v122 = vmul.f32 %v121, 1.442695
    %v123 = vpow.pop %v122
    %v124 = vadd.f32 %v123, 1.0
    %v125 = vrcp.pop %v124
    %v126 = vmul.f32 %v124, %v125
    %v127 = vsub.f32 1.0, %v126
    %v128 = vmul.f32 %v125, %v127
    %v129 = vadd.f32 %v125, %v128
    %vm130 = vweird.f32 %v124
    %vm131 = vweird.f32 %v125
    %vm132 = vmor %vm130, %vm131
    %v133 = vsel %vm132, %v125, %v129
    %v134 = vand.u32 2147483647, %v124
    %vm135 = vcmp.eq.f32.partialorder %v134, 8.507059e+37
    %v136 = vand.u32 %v124, 2147483648
    %v137 = vor.u32 1.1754944e-38, %v136
    %v138 = vsel %vm135, %v137, %v133
    %v139 = vmul.f32 1.0, %v138
    %v141 = vrot.slane %v139, 4
    %v143 = vmul.f32 %v120, %v141
    %s144 = smul.u32 0, 4
    %s145 = sadd.s32 %s144, 4
    %s146 = scalar_lea.vmem [#allocation2], %s145
    %v147 = vld [vmem:[%s146] sm:$0xf]
    %v148 = vmul.f32 %v143, %v147
    %vm149 = vcmask 257024
    %150 = vst.msk [vmem:[#allocation7] sm:$0xf] %vm149, %v148
    %v151 = vld [vmem:[#allocation5] sm:$0xf]
    %v152 = vmul.f32 %v143, %v151
    %153 = vst.msk [vmem:[#allocation8] sm:$0xf] %vm149, %v152
    // Predicated region
    $region26: #{tpu_custom_call.1} parent=1 // pred_check
      _
    $region27: #{tpu_custom_call.1} parent=1 // pred_check_branch
      %155 = sbr.rel (0) target = $region29
    $region28: #{tpu_custom_call.1} parent=1 // pred_region
      %157 = vsyncadd [#allocation4], 0
      %s159 = sshll.u32 [#allocation7], 4
      %s160 = int_to_ptr.vmem [resolvable:$true] %s159
      %s161 = sshll.u32 %s4, 4
      %s162 = int_to_ptr.hbm [resolvable:$true] %s161
      %164 = dma.vmem_to_hbm [thread:$0]  %s160, 64, %s162, [#allocation4]
    $region29: #{tpu_custom_call.1} parent=1 // pred_fallthru
      _
    // Predicated region
    $region30: #{tpu_custom_call.1} parent=1 // pred_check
      _
    $region31: #{tpu_custom_call.1} parent=1 // pred_check_branch
      %166 = sbr.rel (0) target = $region33
    $region32: #{tpu_custom_call.1} parent=1 // pred_region
      %168 = vsyncadd [#allocation9], 0
      %s170 = sshll.u32 [#allocation8], 4
      %s171 = int_to_ptr.vmem [resolvable:$true] %s170
      %s172 = sshll.u32 %s5, 4
      %s173 = int_to_ptr.hbm [resolvable:$true] %s172
      %175 = dma.vmem_to_hbm [thread:$0]  %s171, 64, %s173, [#allocation9]
    $region33: #{tpu_custom_call.1} parent=1 // pred_fallthru
      _
    // Predicated region
    $region34: #{tpu_custom_call.1} parent=1 // pred_check
      _
    $region35: #{tpu_custom_call.1} parent=1 // pred_check_branch
      %177 = sbr.rel (0) target = $region37
    $region36: #{tpu_custom_call.1} parent=1 // pred_region
      %179 = dma.done [#allocation4], 64
    $region37: #{tpu_custom_call.1} parent=1 // pred_fallthru
      _
    // Predicated region
    $region38: #{tpu_custom_call.1} parent=1 // pred_check
      _
    $region39: #{tpu_custom_call.1} parent=1 // pred_check_branch
      %181 = sbr.rel (0) target = $region41
    $region40: #{tpu_custom_call.1} parent=1 // pred_region
      %183 = dma.done [#allocation9], 64
    $region41: #{tpu_custom_call.1} parent=1 // pred_fallthru
      _
    %184 = vsyncpa [#allocation3], 1
    %185 = vsyncpa [#allocation6], 1
    %186 = vsyncpa [#allocation4], 1
    %187 = vsyncpa [#allocation9], 1

// kernel: tpu_custom_call.1
$region0: #{tpu_custom_call.1}
  #allocation0 [shape = 'u32[]', space=smem, size = 0x4, offset = 0x4, fixed_abs, tag = 'smem constant byte address 0x4 - core index']
  #allocation1 [shape = 'u32[72,128]{1,0:T(1,128)}', space=vmem, size = 0x9000, scoped, tag = 'internal scratch']
  %s0 = inlined_call_operand.hbm [shape: f32[12,32], index: 0, kind: input, shape index: {}]
  %s1 = inlined_call_operand.hbm [shape: f32[4,32], index: 1, kind: input, shape index: {}]
  %s2 = inlined_call_operand.vmem [shape: f32[8,12], index: 2, kind: input, shape index: {}]
  %s3 = inlined_call_operand.vmem [shape: f32[8,2], index: 3, kind: input, shape index: {}]
  %s4 = inlined_call_operand.hbm [shape: f32[4,32], index: 4, kind: output, shape index: {0}]
  %s5 = inlined_call_operand.hbm [shape: f32[4,32], index: 5, kind: output, shape index: {1}]
  %6 = xla_tuple %s4, %s5
  %s7 = sld [smem:[#allocation0]]
  $region42: #{tpu_custom_call.1} parent=0
    _
  %s9 = ssub.s32 1, %s7
  %s10 = scalar_select 0, %s9, %s7
  $region1: #{tpu_custom_call.1} parent=0
    #allocation2 [shape = 'u8[8192]{0}', space=vmem, size = 0x2000, scoped, tag = 'input window, operand 0, single buffered']
    #allocation3 [shape = 's32[1]{0}', space=sflag, size = 0x4, scoped, tag = 'scoped memory for tpu_custom_call.1']
    #allocation4 [shape = 's32[1]{0}', space=sflag, size = 0x4, scoped, tag = 'scoped memory for tpu_custom_call.1']
    #allocation5 [shape = 'u8[2048]{0}', space=vmem, size = 0x800, scoped, tag = 'input window, operand 1, single buffered']
    #allocation6 [shape = 's32[1]{0}', space=sflag, size = 0x4, scoped, tag = 'scoped memory for tpu_custom_call.1']
    #allocation7 [shape = 'u8[2048]{0}', space=vmem, size = 0x800, scoped, tag = 'output window, operand 0, single buffered']
    #allocation8 [shape = 'u8[2048]{0}', space=vmem, size = 0x800, scoped, tag = 'output window, operand 1, single buffered']
    #allocation9 [shape = 's32[1]{0}', space=sflag, size = 0x4, scoped, tag = 'scoped memory for tpu_custom_call.1']
    %11 = vsyncpa [#allocation3], 0
    %12 = vsyncpa [#allocation6], 0
    %13 = vsyncpa [#allocation4], 0
    %14 = vsyncpa [#allocation9], 0
    // Predicated region
    $region2: #{tpu_custom_call.1} parent=1 // pred_check
      _
    $region3: #{tpu_custom_call.1} parent=1 // pred_check_branch
      %16 = sbr.rel (0) target = $region5
    $region4: #{tpu_custom_call.1} parent=1 // pred_region
      %18 = vsyncadd [#allocation3], 0
      %s19 = sshll.u32 %s0, 4
      %s20 = int_to_ptr.hbm [resolvable:$true] %s19
      %s21 = sshll.u32 [#allocation2], 4
      %s22 = int_to_ptr.vmem [resolvable:$true] %s21
      %27 = dma.hbm_to_vmem [thread:$0]  %s20, 256, %s22, [#allocation3], 128, 128, 8
    $region5: #{tpu_custom_call.1} parent=1 // pred_fallthru
      _
    // Predicated region
    $region6: #{tpu_custom_call.1} parent=1 // pred_check
      _
    $region7: #{tpu_custom_call.1} parent=1 // pred_check_branch
      %29 = sbr.rel (0) target = $region9
    $region8: #{tpu_custom_call.1} parent=1 // pred_region
      %31 = vsyncadd [#allocation6], 0
      %s33 = sshll.u32 %s1, 4
      %s34 = int_to_ptr.hbm [resolvable:$true] %s33
      %s35 = sshll.u32 [#allocation5], 4
      %s36 = int_to_ptr.vmem [resolvable:$true] %s35
      %38 = dma.hbm_to_vmem [thread:$0]  %s34, 64, %s36, [#allocation6]
    $region9: #{tpu_custom_call.1} parent=1 // pred_fallthru
      _
    // Predicated region
    $region10: #{tpu_custom_call.1} parent=1 // pred_check
      _
    $region11: #{tpu_custom_call.1} parent=1 // pred_check_branch
      %40 = sbr.rel (0) target = $region13
    $region12: #{tpu_custom_call.1} parent=1 // pred_region
      _
    $region13: #{tpu_custom_call.1} parent=1 // pred_fallthru
      _
    // Predicated region
    $region14: #{tpu_custom_call.1} parent=1 // pred_check
      _
    $region15: #{tpu_custom_call.1} parent=1 // pred_check_branch
      %42 = sbr.rel (0) target = $region17
    $region16: #{tpu_custom_call.1} parent=1 // pred_region
      _
    $region17: #{tpu_custom_call.1} parent=1 // pred_fallthru
      _
    // Predicated region
    $region18: #{tpu_custom_call.1} parent=1 // pred_check
      _
    $region19: #{tpu_custom_call.1} parent=1 // pred_check_branch
      %44 = sbr.rel (0) target = $region21
    $region20: #{tpu_custom_call.1} parent=1 // pred_region
      %46 = dma.done [#allocation3], 256
    $region21: #{tpu_custom_call.1} parent=1 // pred_fallthru
      _
    // Predicated region
    $region22: #{tpu_custom_call.1} parent=1 // pred_check
      _
    $region23: #{tpu_custom_call.1} parent=1 // pred_check_branch
      %48 = sbr.rel (0) target = $region25
    $region24: #{tpu_custom_call.1} parent=1 // pred_region
      %50 = dma.done [#allocation6], 64
    $region25: #{tpu_custom_call.1} parent=1 // pred_fallthru
      _
    %v51 = vld [vmem:[%s2] sm:$0xff]
    %v52 = vld [vmem:[#allocation2] sm:$0xff]
    %v53 = vld [vmem:[#allocation2 + $0x8] sm:$0xf]
    %vm54 = vcmask 97280
    %v56 = vsel %vm54, %v51, 0
    %vm58 = vcmask 1043456
    %v60 = vsel %vm58, %v53, 0
    %62 = vmatpush.msra.mxu0 0.0
    %63 = vmatpush.msra.mxu0 0.0
    %64 = vmatpush.msra.mxu0 0.0
    %65 = vmatpush.msra.mxu0 0.0
    %66 = vmatpush.msra.mxu0 0.0
    %67 = vmatpush.msra.mxu0 0.0
    %68 = vmatpush.msra.mxu0 0.0
    %69 = vmatpush.msra.mxu0 0.0
    %70 = vmatpush.msra.mxu0 0.0
    %71 = vmatpush.msra.mxu0 0.0
    %72 = vmatpush.msra.mxu0 0.0
    %73 = vmatpush.msra.mxu0 0.0
    %74 = vmatpush.msra.mxu0 0.0
    %75 = vmatpush.msra.mxu0 0.0
    %76 = vmatpush.msra.mxu0 %v60
    %77 = vmatpush.msra.mxu0 %v52
    %78 = vmatmul.f32.gmra.mxu0 %v56
    %v79 = vpop.f32.mrf.mxu0
    %v80 = vadd.f32 0.0, %v79
    %81 = vdwg.mxu0
    %vm82 = vcmask 261120
    %v83 = vsel %vm82, %v80, 0.0
    %84 = vadd.xlane.f32.xlu0 %v83
    %v85 = vpop.xlane.xlu0 %84
    %v86 = vmul.f32 %v85, 0.03125
    %v87 = vmul.f32 %v80, %v80
    %v88 = vsel %vm82, %v87, 0.0
    %89 = vadd.xlane.f32.xlu0 %v88
    %v90 = vpop.xlane.xlu0 %89
    %v91 = vmul.f32 %v90, 0.03125
    %v92 = vmul.f32 %v86, %v86
    %v93 = vsub.f32 %v91, %v92
    %v94 = vld [vmem:[%s3] sm:$0xff]
    %v95 = vadd.f32 %v93, 1e-05
    %v96 = vrsqrt.pop %v95
    %v97 = vmul.f32 %v96, %v95
    %v98 = vmul.f32 %v97, %v96
    %v99 = vmul.f32 0.5, %v98
    %v100 = vsub.f32 1.5, %v99
    %v101 = vmul.f32 %v96, %v100
    %vm102 = vweird.f32 %v95
    %vm103 = vweird.f32 %v96
    %vm104 = vmor %vm102, %vm103
    %v105 = vsel %vm104, %v96, %v101
    %v106 = vmul.f32 %v94, %v105
    %v107 = vsub.f32 %v80, %v86
    %109 = vset.pattern.permute.xlu0 0
    %110 = vperm.xlu0 %109, %v106
    %v111 = vpop.permute.xlu0 %110
    %v113 = vmul.f32 %v107, %v111
    %115 = vset.pattern.permute.xlu0 1
    %116 = vperm.xlu0 %115, %v94
    %v117 = vpop.permute.xlu0 %116
    %v119 = vadd.f32 %v113, %v117
    %v120 = vtanh.pop %v119
    %v121 = vxor.u32 %v119, 2147483648
    %v122 = vmul.f32 %v121, 1.442695
    %v123 = vpow.pop %v122
    %v124 = vadd.f32 %v123, 1.0
    %v125 = vrcp.pop %v124
    %v126 = vmul.f32 %v124, %v125
    %v127 = vsub.f32 1.0, %v126
    %v128 = vmul.f32 %v125, %v127
    %v129 = vadd.f32 %v125, %v128
    %vm130 = vweird.f32 %v124
    %vm131 = vweird.f32 %v125
    %vm132 = vmor %vm130, %vm131
    %v133 = vsel %vm132, %v125, %v129
    %v134 = vand.u32 2147483647, %v124
    %vm135 = vcmp.eq.f32.partialorder %v134, 8.507059e+37
    %v136 = vand.u32 %v124, 2147483648
    %v137 = vor.u32 1.1754944e-38, %v136
    %v138 = vsel %vm135, %v137, %v133
    %v139 = vmul.f32 1.0, %v138
    %v141 = vrot.slane %v139, 4
    %v143 = vmul.f32 %v120, %v141
    %s144 = smul.u32 0, 4
    %s145 = sadd.s32 %s144, 4
    %s146 = scalar_lea.vmem [#allocation2], %s145
    %v147 = vld [vmem:[%s146] sm:$0xf]
    %v148 = vmul.f32 %v143, %v147
    %vm149 = vcmask 257024
    %150 = vst.msk [vmem:[#allocation7] sm:$0xf] %vm149, %v148
    %v151 = vld [vmem:[#allocation5] sm:$0xf]
    %v152 = vmul.f32 %v143, %v151
    %153 = vst.msk [vmem:[#allocation8] sm:$0xf] %vm149, %v152
    // Predicated region
    $region26: #{tpu_custom_call.1} parent=1 // pred_check
      _
    $region27: #{tpu_custom_call.1} parent=1 // pred_check_branch
      %155 = sbr.rel (0) target = $region29
    $region28: #{tpu_custom_call.1} parent=1 // pred_region
      %157 = vsyncadd [#allocation4], 0
      %s159 = sshll.u32 [#allocation7], 4
      %s160 = int_to_ptr.vmem [resolvable:$true] %s159
      %s161 = sshll.u32 %s4, 4
      %s162 = int_to_ptr.hbm [resolvable:$true] %s161
      %164 = dma.vmem_to_hbm [thread:$0]  %s160, 64, %s162, [#allocation4]
    $region29: #{tpu_custom_call.1} parent=1 // pred_fallthru
      _
    // Predicated region
    $region30: #{tpu_custom_call.1} parent=1 // pred_check
      _
    $region31: #{tpu_custom_call.1} parent=1 // pred_check_branch
      %166 = sbr.rel (0) target = $region33
    $region32: #{tpu_custom_call.1} parent=1 // pred_region
      %168 = vsyncadd [#allocation9], 0
      %s170 = sshll.u32 [#allocation8], 4
      %s171 = int_to_ptr.vmem [resolvable:$true] %s170
      %s172 = sshll.u32 %s5, 4
      %s173 = int_to_ptr.hbm [resolvable:$true] %s172
      %175 = dma.vmem_to_hbm [thread:$0]  %s171, 64, %s173, [#allocation9]
    $region33: #{tpu_custom_call.1} parent=1 // pred_fallthru
      _
    // Predicated region
    $region34: #{tpu_custom_call.1} parent=1 // pred_check
      _
    $region35: #{tpu_custom_call.1} parent=1 // pred_check_branch
      %177 = sbr.rel (0) target = $region37
    $region36: #{tpu_custom_call.1} parent=1 // pred_region
      %179 = dma.done [#allocation4], 64
    $region37: #{tpu_custom_call.1} parent=1 // pred_fallthru
      _
    // Predicated region
    $region38: #{tpu_custom_call.1} parent=1 // pred_check
      _
    $region39: #{tpu_custom_call.1} parent=1 // pred_check_branch
      %181 = sbr.rel (0) target = $region41
    $region40: #{tpu_custom_call.1} parent=1 // pred_region
      %183 = dma.done [#allocation9], 64
    $region41: #{tpu_custom_call.1} parent=1 // pred_fallthru
      _
    %184 = vsyncpa [#allocation3], 1
    %185 = vsyncpa [#allocation6], 1
    %186 = vsyncpa [#allocation4], 1
    %187 = vsyncpa [#allocation9], 1

</llo_original>
